<compile_context>
chip_gen: v7x
topology: tpu7x:2x2x1
jax: 0.10.0
libtpu: 0.0.40
codegen_flags: <defaults>
</compile_context>

<pallas_src>
import jax
import jax.numpy as jnp
from jax.experimental import pallas as pl
from jax.experimental.pallas import tpu as pltpu


def gmf_kernel(uidx_ref, iidx_ref,            # scalar-prefetch (SMEM): (Bp,) i32 each
               utab_hbm, itab_hbm,            # HBM refs (U, E), (I, E) f32
               w_ref, b_ref,                  # (1, E) VMEM, (1, 1) SMEM
               o_ref,                         # (1, TB) VMEM output block
               u_buf, i_buf, sem):            # scratch: (TB, E) x2, DMA sems (2,)
    TB, E = u_buf.shape
    t = pl.program_id(0)
    base = t * TB

    # --- Gather: one row DMA per batch element, from HBM table -> VMEM buffer.
    @pl.loop(0, TB)
    def _issue(r):
        u = uidx_ref[base + r]
        i = iidx_ref[base + r]
        pltpu.make_async_copy(utab_hbm.at[pl.ds(u, 1), :],
                              u_buf.at[pl.ds(r, 1), :], sem.at[0]).start()
        pltpu.make_async_copy(itab_hbm.at[pl.ds(i, 1), :],
                              i_buf.at[pl.ds(r, 1), :], sem.at[1]).start()

    # Wait for all issued copies (one matching wait per issued copy; the
    # shared semaphore accumulates, so the loop completes only when every
    # row has landed).
    @pl.loop(0, TB)
    def _wait(r):
        pltpu.make_async_copy(utab_hbm.at[pl.ds(0, 1), :],
                              u_buf.at[pl.ds(r, 1), :], sem.at[0]).wait()
        pltpu.make_async_copy(itab_hbm.at[pl.ds(0, 1), :],
                              i_buf.at[pl.ds(r, 1), :], sem.at[1]).wait()

    # --- Compute: elementwise product (VPU) + E->1 reduce (XLU) + sigmoid (EUP).
    prod = u_buf[...] * i_buf[...]                       # (TB, E)
    logits = jnp.sum(prod * w_ref[...], axis=-1)         # (TB,)
    rating = jax.nn.sigmoid(logits + b_ref[0, 0])        # (TB,)
    o_ref[...] = rating.reshape(1, TB)                   # lane-dense store


def gmf_forward(user_indices, item_indices, user_table, item_table, w, b,
                *, max_tile=256):
    """user_indices/item_indices: (B,) int.  Returns (B, 1) float32 ratings."""
    U, E = user_table.shape
    I = item_table.shape[0]
    B = user_indices.shape[0]

    # Clamp (nn.Embedding would raise on OOB; DMA gather has no runtime check).
    uidx = jnp.clip(user_indices.astype(jnp.int32), 0, U - 1)
    iidx = jnp.clip(item_indices.astype(jnp.int32), 0, I - 1)

    if B <= max_tile:
        TB, Bp = B, B                      # single tile, block == full array
    else:
        TB = max_tile                      # multiple of 128 -> unmasked stores
        Bp = ((B + TB - 1) // TB) * TB
        pad = Bp - B
        uidx = jnp.pad(uidx, (0, pad))
        iidx = jnp.pad(iidx, (0, pad))

    w_row = w.reshape(1, E).astype(jnp.float32)
    b_2d = b.reshape(1, 1).astype(jnp.float32)
    utab = user_table.astype(jnp.float32)
    itab = item_table.astype(jnp.float32)

    out = pl.pallas_call(
        gmf_kernel,
        out_shape=jax.ShapeDtypeStruct((1, Bp), jnp.float32),
        grid_spec=pltpu.PrefetchScalarGridSpec(
            num_scalar_prefetch=2,                 # uidx, iidx -> SMEM
            grid=(Bp // TB,),
            in_specs=[
                pl.BlockSpec(memory_space=pl.ANY),                   # user table (HBM)
                pl.BlockSpec(memory_space=pl.ANY),                   # item table (HBM)
                pl.BlockSpec((1, E), lambda t, u, i: (0, 0)),        # Linear weight
                pl.BlockSpec(memory_space=pltpu.MemorySpace.SMEM),   # Linear bias
            ],
            out_specs=pl.BlockSpec((1, TB), lambda t, u, i: (0, t)),
            scratch_shapes=[
                pltpu.VMEM((TB, E), jnp.float32),      # gathered user rows
                pltpu.VMEM((TB, E), jnp.float32),      # gathered item rows
                pltpu.SemaphoreType.DMA((2,)),         # user / item gather sems
            ],
        ),
        compiler_params=pltpu.CompilerParams(
            dimension_semantics=("parallel",)),        # shard tiles on v7x megacore
    )(uidx, iidx, utab, itab, w_row, b_2d)

    return out[0, :B].reshape(B, 1)


def gmf_reference(user_indices, item_indices, user_table, item_table, w, b):
    u = user_table[user_indices]
    i = item_table[item_indices]
    logits = (u * i) @ w.reshape(-1, 1) + b.reshape(1, 1)
    return jax.nn.sigmoid(logits)


if __name__ == "__main__":
    NUM_USERS = 16
    NUM_ITEMS = 24
    EMB = 32
    BATCH = 8

    key = jax.random.PRNGKey(0)
    k_ut, k_it, k_w, k_b, k_u, k_i = jax.random.split(key, 6)

    # Deterministic parameter init (matches module __init__ shapes):
    #   nn.Embedding -> N(0, 1);  nn.Linear(E, 1) -> U(-1/sqrt(E), 1/sqrt(E)).
    user_table = jax.random.normal(k_ut, (NUM_USERS, EMB), dtype=jnp.float32)
    item_table = jax.random.normal(k_it, (NUM_ITEMS, EMB), dtype=jnp.float32)
    bound = 1.0 / (EMB ** 0.5)
    w = jax.random.uniform(k_w, (EMB,), minval=-bound, maxval=bound,
                           dtype=jnp.float32)
    b = jax.random.uniform(k_b, (1,), minval=-bound, maxval=bound,
                           dtype=jnp.float32)

    user_indices = jax.random.randint(k_u, (BATCH,), 0, NUM_USERS, dtype=jnp.int32)
    item_indices = jax.random.randint(k_i, (BATCH,), 0, NUM_ITEMS, dtype=jnp.int32)

    out = gmf_forward(user_indices, item_indices, user_table, item_table, w, b)
    out = jax.block_until_ready(out)

    ref = gmf_reference(user_indices, item_indices, user_table, item_table, w, b)
    assert out.shape == (BATCH, 1), out.shape
    assert jnp.allclose(out, ref, atol=1e-5, rtol=1e-5), (out, ref)

    print("KERNEL_OK")
</pallas_src>

<mosaic_0001>
module attributes {stable_mosaic.version = 11 : i64} {
  func.func @gmf_kernel(%arg0: i32, %arg1: memref<8xi32, #tpu.memory_space<smem>>, %arg2: memref<8xi32, #tpu.memory_space<smem>>, %arg3: memref<16x32xf32, #tpu.memory_space<any>>, %arg4: memref<24x32xf32, #tpu.memory_space<any>>, %arg5: memref<1x32xf32, #tpu.memory_space<vmem>>, %arg6: memref<1x1xf32, #tpu.memory_space<smem>>, %arg7: memref<1x8xf32, #tpu.memory_space<vmem>>, %arg8: memref<8x32xf32, #tpu.memory_space<vmem>>, %arg9: memref<8x32xf32, #tpu.memory_space<vmem>>, %arg10: memref<2x!tpu.dma_semaphore, #tpu.memory_space<semaphore_mem>>) attributes {dimension_semantics = [#tpu.dimension_semantics<parallel>], iteration_bounds = array<i64: 1>, scalar_prefetch = 2 : i64, scratch_operands = 3 : i64, tpu.core_type = #tpu.core_type<tc>, window_params = [{}, {}, {pipeline_mode = #tpu.pipeline_mode<synchronous>, transform_indices = @transform_2, window_bounds = array<i64: 1, 32>}, {transform_indices = @transform_3, window_bounds = array<i64: 1, 1>}, {transform_indices = @transform_4, window_bounds = array<i64: 1, 8>}]} {
    %c8_i32 = arith.constant 8 : i32
    %0 = arith.muli %arg0, %c8_i32 : i32
    %c0_i32 = arith.constant 0 : i32
    %c8_i32_0 = arith.constant 8 : i32
    %1 = arith.addi %c0_i32, %c8_i32_0 : i32
    %c1_i32 = arith.constant 1 : i32
    scf.for %arg11 = %c0_i32 to %1 step %c1_i32  : i32 {
      %c1_i32_16 = arith.constant 1 : i32
      %20 = arith.muli %arg11, %c1_i32_16 : i32
      %c0_i32_17 = arith.constant 0 : i32
      %21 = arith.addi %c0_i32_17, %20 : i32
      %22 = arith.addi %0, %21 : i32
      %23 = arith.index_cast %22 : i32 to index
      %24 = memref.load %arg1[%23] : memref<8xi32, #tpu.memory_space<smem>>
      %25 = arith.addi %0, %21 : i32
      %26 = arith.index_cast %25 : i32 to index
      %27 = memref.load %arg2[%26] : memref<8xi32, #tpu.memory_space<smem>>
      %c0_i32_18 = arith.constant 0 : i32
      %c0_i32_19 = arith.constant 0 : i32
      %28 = tpu.memref_slice %arg3[%24, %c0_i32_19] : memref<16x32xf32, #tpu.memory_space<any>> -> memref<1x32xf32, #tpu.memory_space<any>>
      %c0_i32_20 = arith.constant 0 : i32
      %29 = tpu.memref_slice %arg8[%21, %c0_i32_20] : memref<8x32xf32, #tpu.memory_space<vmem>> -> memref<1x32xf32, #tpu.memory_space<vmem>>
      %30 = tpu.memref_slice %arg10[%c0_i32_18] : memref<2x!tpu.dma_semaphore, #tpu.memory_space<semaphore_mem>> -> memref<1x!tpu.dma_semaphore, #tpu.memory_space<semaphore_mem>>
      %31 = tpu.memref_squeeze %30 : memref<1x!tpu.dma_semaphore, #tpu.memory_space<semaphore_mem>> -> memref<!tpu.dma_semaphore, #tpu.memory_space<semaphore_mem>>
      tpu.enqueue_dma source(%28 : memref<1x32xf32, #tpu.memory_space<any>>) target(%29 : memref<1x32xf32, #tpu.memory_space<vmem>>) target_semaphore(%31 : memref<!tpu.dma_semaphore, #tpu.memory_space<semaphore_mem>>)
      %c1_i32_21 = arith.constant 1 : i32
      %c0_i32_22 = arith.constant 0 : i32
      %32 = tpu.memref_slice %arg4[%27, %c0_i32_22] : memref<24x32xf32, #tpu.memory_space<any>> -> memref<1x32xf32, #tpu.memory_space<any>>
      %c0_i32_23 = arith.constant 0 : i32
      %33 = tpu.memref_slice %arg9[%21, %c0_i32_23] : memref<8x32xf32, #tpu.memory_space<vmem>> -> memref<1x32xf32, #tpu.memory_space<vmem>>
      %34 = tpu.memref_slice %arg10[%c1_i32_21] : memref<2x!tpu.dma_semaphore, #tpu.memory_space<semaphore_mem>> -> memref<1x!tpu.dma_semaphore, #tpu.memory_space<semaphore_mem>>
      %35 = tpu.memref_squeeze %34 : memref<1x!tpu.dma_semaphore, #tpu.memory_space<semaphore_mem>> -> memref<!tpu.dma_semaphore, #tpu.memory_space<semaphore_mem>>
      tpu.enqueue_dma source(%32 : memref<1x32xf32, #tpu.memory_space<any>>) target(%33 : memref<1x32xf32, #tpu.memory_space<vmem>>) target_semaphore(%35 : memref<!tpu.dma_semaphore, #tpu.memory_space<semaphore_mem>>)
    }
    %c8_i32_1 = arith.constant 8 : i32
    %c0_i32_2 = arith.constant 0 : i32
    %c8_i32_3 = arith.constant 8 : i32
    %2 = arith.addi %c0_i32_2, %c8_i32_3 : i32
    %c1_i32_4 = arith.constant 1 : i32
    scf.for %arg11 = %c0_i32_2 to %2 step %c1_i32_4  : i32 {
      %c1_i32_16 = arith.constant 1 : i32
      %20 = arith.muli %arg11, %c1_i32_16 : i32
      %c0_i32_17 = arith.constant 0 : i32
      %21 = arith.addi %c0_i32_17, %20 : i32
      %c0_i32_18 = arith.constant 0 : i32
      %c0_i32_19 = arith.constant 0 : i32
      %c0_i32_20 = arith.constant 0 : i32
      %22 = tpu.memref_slice %arg3[%c0_i32_19, %c0_i32_20] : memref<16x32xf32, #tpu.memory_space<any>> -> memref<1x32xf32, #tpu.memory_space<any>>
      %c0_i32_21 = arith.constant 0 : i32
      %23 = tpu.memref_slice %arg8[%21, %c0_i32_21] : memref<8x32xf32, #tpu.memory_space<vmem>> -> memref<1x32xf32, #tpu.memory_space<vmem>>
      %24 = tpu.memref_slice %arg10[%c0_i32_18] : memref<2x!tpu.dma_semaphore, #tpu.memory_space<semaphore_mem>> -> memref<1x!tpu.dma_semaphore, #tpu.memory_space<semaphore_mem>>
      %25 = tpu.memref_squeeze %24 : memref<1x!tpu.dma_semaphore, #tpu.memory_space<semaphore_mem>> -> memref<!tpu.dma_semaphore, #tpu.memory_space<semaphore_mem>>
      tpu.wait_dma2 semaphore(%25 : memref<!tpu.dma_semaphore, #tpu.memory_space<semaphore_mem>>) src(%22 : memref<1x32xf32, #tpu.memory_space<any>>) dst(%23 : memref<1x32xf32, #tpu.memory_space<vmem>>)
      %c1_i32_22 = arith.constant 1 : i32
      %c0_i32_23 = arith.constant 0 : i32
      %c0_i32_24 = arith.constant 0 : i32
      %26 = tpu.memref_slice %arg4[%c0_i32_23, %c0_i32_24] : memref<24x32xf32, #tpu.memory_space<any>> -> memref<1x32xf32, #tpu.memory_space<any>>
      %c0_i32_25 = arith.constant 0 : i32
      %27 = tpu.memref_slice %arg9[%21, %c0_i32_25] : memref<8x32xf32, #tpu.memory_space<vmem>> -> memref<1x32xf32, #tpu.memory_space<vmem>>
      %28 = tpu.memref_slice %arg10[%c1_i32_22] : memref<2x!tpu.dma_semaphore, #tpu.memory_space<semaphore_mem>> -> memref<1x!tpu.dma_semaphore, #tpu.memory_space<semaphore_mem>>
      %29 = tpu.memref_squeeze %28 : memref<1x!tpu.dma_semaphore, #tpu.memory_space<semaphore_mem>> -> memref<!tpu.dma_semaphore, #tpu.memory_space<semaphore_mem>>
      tpu.wait_dma2 semaphore(%29 : memref<!tpu.dma_semaphore, #tpu.memory_space<semaphore_mem>>) src(%26 : memref<1x32xf32, #tpu.memory_space<any>>) dst(%27 : memref<1x32xf32, #tpu.memory_space<vmem>>)
    }
    %c8_i32_5 = arith.constant 8 : i32
    %c0 = arith.constant 0 : index
    %c0_6 = arith.constant 0 : index
    %3 = vector.load %arg8[%c0, %c0_6] : memref<8x32xf32, #tpu.memory_space<vmem>>, vector<8x32xf32>
    %c0_7 = arith.constant 0 : index
    %c0_8 = arith.constant 0 : index
    %4 = vector.load %arg9[%c0_7, %c0_8] : memref<8x32xf32, #tpu.memory_space<vmem>>, vector<8x32xf32>
    %5 = arith.mulf %3, %4 : vector<8x32xf32>
    %c0_9 = arith.constant 0 : index
    %c0_10 = arith.constant 0 : index
    %6 = vector.load %arg5[%c0_9, %c0_10] : memref<1x32xf32, #tpu.memory_space<vmem>>, vector<1x32xf32>
    %7 = vector.broadcast %6 : vector<1x32xf32> to vector<8x32xf32>
    %8 = arith.mulf %5, %7 : vector<8x32xf32>
    %cst = arith.constant dense<0.000000e+00> : vector<8xf32>
    %9 = vector.multi_reduction <add>, %8, %cst [1] : vector<8x32xf32> to vector<8xf32>
    %c0_11 = arith.constant 0 : index
    %c0_12 = arith.constant 0 : index
    %10 = memref.load %arg6[%c0_11, %c0_12] : memref<1x1xf32, #tpu.memory_space<smem>>
    %11 = vector.broadcast %10 : f32 to vector<8xf32>
    %12 = arith.addf %9, %11 : vector<8xf32>
    %13 = arith.negf %12 : vector<8xf32>
    %14 = math.exp %13 : vector<8xf32>
    %cst_13 = arith.constant 1.000000e+00 : f32
    %15 = vector.broadcast %cst_13 : f32 to vector<8xf32>
    %16 = arith.addf %15, %14 : vector<8xf32>
    %17 = arith.divf %15, %16 : vector<8xf32>
    %18 = vector.shape_cast %17 : vector<8xf32> to vector<1x8xf32>
    %c0_14 = arith.constant 0 : index
    %c0_15 = arith.constant 0 : index
    %19 = vector.load %arg7[%c0_14, %c0_15] : memref<1x8xf32, #tpu.memory_space<vmem>>, vector<1x8xf32>
    tpu.vector_store %arg7[%c0_14, %c0_15], %18 {strides = array<i32>} : memref<1x8xf32, #tpu.memory_space<vmem>>, vector<1x8xf32>,
    return
  }
  func.func @transform_2(%arg0: i32, %arg1: memref<8xi32, #tpu.memory_space<smem>>, %arg2: memref<8xi32, #tpu.memory_space<smem>>) -> (i32, i32) {
    %c0_i32 = arith.constant 0 : i32
    %c0_i32_0 = arith.constant 0 : i32
    %c0_i32_1 = arith.constant 0 : i32
    return %c0_i32, %c0_i32_0 : i32, i32
  }
  func.func @transform_3(%arg0: i32, %arg1: memref<8xi32, #tpu.memory_space<smem>>, %arg2: memref<8xi32, #tpu.memory_space<smem>>) -> (i32, i32) {
    %c0_i32 = arith.constant 0 : i32
    %c0_i32_0 = arith.constant 0 : i32
    %c0_i32_1 = arith.constant 0 : i32
    return %c0_i32, %c0_i32_0 : i32, i32
  }
  func.func @transform_4(%arg0: i32, %arg1: memref<8xi32, #tpu.memory_space<smem>>, %arg2: memref<8xi32, #tpu.memory_space<smem>>) -> (i32, i32) {
    %c0_i32 = arith.constant 0 : i32
    %c0_i32_0 = arith.constant 0 : i32
    return %c0_i32, %arg0 : i32, i32
  }
}

</mosaic_0001>

<llo_original>
// kernel: tpu_custom_call.1
$region0: #{tpu_custom_call.1}
  #allocation0 [shape = 'u32[]', space=smem, size = 0x4, offset = 0x4, fixed_abs, tag = 'smem constant byte address 0x4 - core index']
  #allocation1 [shape = 'u32[144,128]{1,0:T(1,128)}', space=vmem, size = 0x12000, scoped, tag = 'internal scratch']
  #allocation2 [shape = 'f32[8,32]{1,0:T(8,128)}', space=vmem, size = 0x1000, scoped, tag = 'scratch operand']
  #allocation3 [shape = 'f32[8,32]{1,0:T(8,128)}', space=vmem, size = 0x1000, scoped, tag = 'scratch operand']
  #allocation4 [shape = 's32[2]{0}', space=sflag, size = 0x8, scoped, tag = 'scratch operand']
  #allocation5 [shape = 's32[1]{0}', space=sflag, size = 0x4, scoped, tag = 'scoped memory for tpu_custom_call.1']
  #allocation6 [shape = 'u8[512]{0}', space=smem, size = 0x200, scoped, tag = 'prefetched SMEM operand 0']
  #allocation7 [shape = 'u8[512]{0}', space=smem, size = 0x200, scoped, tag = 'prefetched SMEM operand 1']
  #allocation8 [shape = 'f32[1,1]{1,0:T(1,128)S(6)}', space=smem, size = 0x200, scoped, tag = 'scoped memory for tpu_custom_call.1']
  #allocation11 [shape = 's32[]', space=sflag, size = 0x4, offset = 0, fixed_abs, tag = 'sflag constant byte address 0x0 - dummy sync flag']
  #allocation12 [shape = 's32[]', space=sflag, size = 0x4, offset = 0, fixed_abs, tag = 'sflag constant byte address 0x0 - dummy sync flag']
  #allocation13 [shape = 'u32[]', space=smem, size = 0x4, offset = 0x44, fixed_abs, tag = 'smem constant byte address 0x44 - assertion arg 0']
  #allocation14 [shape = 'u32[]', space=smem, size = 0x4, offset = 0x48, fixed_abs, tag = 'smem constant byte address 0x48 - assertion arg 1']
  #allocation15 [shape = 's32[]', space=sflag, size = 0x4, offset = 0, fixed_abs, tag = 'sflag constant byte address 0x0 - dummy sync flag']
  #allocation16 [shape = 's32[]', space=sflag, size = 0x4, offset = 0, fixed_abs, tag = 'sflag constant byte address 0x0 - dummy sync flag']
  %s0 = inlined_call_operand.vmem [shape: s32[8], index: 0, kind: input, shape index: {}]
  %s1 = inlined_call_operand.vmem [shape: s32[8], index: 1, kind: input, shape index: {}]
  %s2 = inlined_call_operand.hbm [shape: f32[16,32], index: 2, kind: input, shape index: {}]
  %s3 = inlined_call_operand.hbm [shape: f32[24,32], index: 3, kind: input, shape index: {}]
  %s4 = inlined_call_operand.vmem [shape: f32[1,32], index: 4, kind: input, shape index: {}]
  %s5 = inlined_call_operand.<no memory space> [shape: f32[1,1], index: 5, kind: input, shape index: {}]
  %s6 = inlined_call_operand.hbm [shape: f32[1,8], index: 6, kind: output, shape index: {}]
  %s7 = sld [smem:[#allocation0]]
  $region40: #{tpu_custom_call.1} parent=0
    _
  %s9 = ssub.s32 1, %s7
  %s10 = scalar_select 0, %s9, %s7
  %s11 = sshll.u32 %s0, 4
  %s12 = int_to_ptr.vmem [resolvable:$true] %s11
  %14 = dma.vmem_to_smem %s12, 16, [#allocation6], [#allocation5]
  %s15 = sshll.u32 %s1, 4
  %s16 = int_to_ptr.vmem [resolvable:$true] %s15
  %18 = dma.vmem_to_smem %s16, 16, [#allocation7], [#allocation5]
  %19 = sst [smem:[#allocation8]] %s5
  %20 = dma.done [#allocation5], 32
  %21 = sfence
  $region1: #{tpu_custom_call.1} parent=0
    #allocation9 [shape = 'u8[512]{0}', space=vmem, size = 0x400, scoped, tag = 'output window, operand 0, single buffered']
    #allocation10 [shape = 's32[1]{0}', space=sflag, size = 0x4, scoped, tag = 'scoped memory for tpu_custom_call.1']
    %22 = vsyncpa [#allocation10], 0
    // Predicated region
    $region2: #{tpu_custom_call.1} parent=1 // pred_check
      _
    $region3: #{tpu_custom_call.1} parent=1 // pred_check_branch
      %24 = sbr.rel (0) target = $region5
    $region4: #{tpu_custom_call.1} parent=1 // pred_region
      _
    $region5: #{tpu_custom_call.1} parent=1 // pred_fallthru
      _
    // Predicated region
    $region6: #{tpu_custom_call.1} parent=1 // pred_check
      _
    $region7: #{tpu_custom_call.1} parent=1 // pred_check_branch
      %26 = sbr.rel (0) target = $region9
    $region8: #{tpu_custom_call.1} parent=1 // pred_region
      _
    $region9: #{tpu_custom_call.1} parent=1 // pred_fallthru
      _
    %s27 = smul.u32 0, 8
    loop: start=0, step=1, limit=8
    $region10: #{tpu_custom_call.1} parent=1 // loop_pre_header
      _
    $region11: #{tpu_custom_call.1} parent=1 // loop_header
      %s29 = sphi 0, %s33
      %p30 = scmp.ge.s32.totalorder %s29, 8
    $region12: #{tpu_custom_call.1} parent=1 // loop_header_branch
      %32 = sbr.rel (%p30) target = $region16
    $region13: #{tpu_custom_call.1} parent=1 // loop_body
      %s34 = sadd.s32 %s27, %s29
      %s35 = sld [smem:[#allocation6 + %s34]]
      %s36 = sld [smem:[#allocation7 + %s34]]
      %s37 = smul.addr %s35, 16
      %s38 = scalar_lea.hbm %s2, %s37
      %s39 = scalar_lea.vmem [#allocation2], %s29
      // Predicated region
      $region17: #{tpu_custom_call.1} parent=13 // pred_check
        _
      $region18: #{tpu_custom_call.1} parent=13 // pred_check_branch
        %41 = sbr.rel target = $region20
      $region19: #{tpu_custom_call.1} parent=13 // pred_region
        %42 = sst [smem:[#allocation13]] [#allocation12]
        %43 = sst [smem:[#allocation14]] [#allocation11]
      $region20: #{tpu_custom_call.1} parent=13 // pred_fallthru
        _
      %45 = shalt.err (0)
      %s47 = sshll.u32 %s39, 4
      %s48 = int_to_ptr.vmem [resolvable:$true] %s47
      %50 = dma.hbm_to_vmem [thread:$0]  %s38, 16, %s48, [#allocation4]
      %s51 = smul.addr %s36, 16
      %s52 = scalar_lea.hbm %s3, %s51
      %s53 = scalar_lea.vmem [#allocation3], %s29
      %s54 = scalar_lea.sflag [#allocation4], 1
      // Predicated region
      $region21: #{tpu_custom_call.1} parent=13 // pred_check
        _
      $region22: #{tpu_custom_call.1} parent=13 // pred_check_branch
        %56 = sbr.rel target = $region24
      $region23: #{tpu_custom_call.1} parent=13 // pred_region
        %57 = sst [smem:[#allocation13]] [#allocation16]
        %58 = sst [smem:[#allocation14]] [#allocation15]
      $region24: #{tpu_custom_call.1} parent=13 // pred_fallthru
        _
      %60 = shalt.err (0)
      %s62 = sshll.u32 %s53, 4
      %s63 = int_to_ptr.vmem [resolvable:$true] %s62
      %65 = dma.hbm_to_vmem [thread:$0]  %s52, 16, %s63, %s54
    $region14: #{tpu_custom_call.1} parent=1 // loop_footer
      %s33 = sadd.s32 1, %s29
    $region15: #{tpu_custom_call.1} parent=1 // loop_footer_branch
      %28 = sbr.rel target = $region11
    $region16: #{tpu_custom_call.1} parent=1 // loop_exit
      _
    loop: start=0, step=1, limit=8
    $region25: #{tpu_custom_call.1} parent=1 // loop_pre_header
      _
    $region26: #{tpu_custom_call.1} parent=1 // loop_header
      %s67 = sphi 0, %s71
      %p68 = scmp.ge.s32.totalorder %s67, 8
    $region27: #{tpu_custom_call.1} parent=1 // loop_header_branch
      %70 = sbr.rel (%p68) target = $region31
    $region28: #{tpu_custom_call.1} parent=1 // loop_body
      %s72 = smul.u32 1, 1
      %s73 = sshll.u32 %s72, 4
      %74 = dma.done [#allocation4], %s73
      %s75 = scalar_lea.sflag [#allocation4], 1
      %s76 = sshll.u32 %s72, 4
      %77 = dma.done %s75, %s76
    $region29: #{tpu_custom_call.1} parent=1 // loop_footer
      %s71 = sadd.s32 1, %s67
    $region30: #{tpu_custom_call.1} parent=1 // loop_footer_branch
      %66 = sbr.rel target = $region26
    $region31: #{tpu_custom_call.1} parent=1 // loop_exit
      _
    %v78 = vld [vmem:[#allocation2] sm:$0xff]
    %v79 = vld [vmem:[#allocation3] sm:$0xff]
    %v80 = vmul.f32 %v78, %v79
    %v81 = vld [vmem:[%s4] sm:$0x1]
    %v83 = vlaneseq
    %v84 = vshrl.u32 %v83, 7
    %v85 = vsub.s32 0, %v84
    %v86 = vrot.slane %v81, %v85
    %v88 = vmul.f32 %v80, %v86
    %vm89 = vcmask 261120
    %v90 = vsel %vm89, %v88, 0.0
    %91 = vadd.xlane.f32.xlu0 %v90
    %v92 = vpop.xlane.xlu0 %91
    %s93 = sld [smem:[#allocation8]]
    %v94 = vstv %s93
    %v95 = vadd.f32 %v92, %v94
    %v96 = vxor.u32 %v95, 2147483648
    %v97 = vmul.f32 %v96, 1.442695
    %v98 = vpow.pop %v97
    %v99 = vadd.f32 %v98, 1.0
    %v100 = vrcp.pop %v99
    %v101 = vmul.f32 1.0, %v100
    %v103 = vlaneseq
    %v104 = vand.u32 %v103, 127
    %v105 = vlaneseq
    %v106 = vshrl.u32 %v105, 7
    %v107 = vsub.s32 %v104, %v106
    %v108 = vrot.slane %v101, %v107
    %vm110 = vcmask 57344
    %111 = vst.msk [vmem:[#allocation9] sm:$0x1] %vm110, %v108
    // Predicated region
    $region32: #{tpu_custom_call.1} parent=1 // pred_check
      _
    $region33: #{tpu_custom_call.1} parent=1 // pred_check_branch
      %113 = sbr.rel (0) target = $region35
    $region34: #{tpu_custom_call.1} parent=1 // pred_region
      %s115 = ssub.s32 16, 16
      %116 = vsyncadd [#allocation10], %s115
      %s118 = sshll.u32 [#allocation9], 4
      %s119 = int_to_ptr.vmem [resolvable:$true] %s118
      %121 = dma.vmem_to_hbm [thread:$0]  %s119, 16, %s6, [#allocation10]
    $region35: #{tpu_custom_call.1} parent=1 // pred_fallthru
      _
    // Predicated region
    $region36: #{tpu_custom_call.1} parent=1 // pred_check
      _
    $region37: #{tpu_custom_call.1} parent=1 // pred_check_branch
      %123 = sbr.rel (0) target = $region39
    $region38: #{tpu_custom_call.1} parent=1 // pred_region
      %124 = dma.done [#allocation10], 16
    $region39: #{tpu_custom_call.1} parent=1 // pred_fallthru
      _
    %125 = vsyncpa [#allocation10], 1
  %126 = vsyncmov [#allocation4]
  %s127 = vpop.sfrf %126
  %p128 = scmp.eq.s32.totalorder %s127, 0
  %p129 = pneg %p128
  %131 = shalt.err (%p129)
  %s132 = scalar_lea.sflag [#allocation4], 1
  %133 = vsyncmov %s132
  %s134 = vpop.sfrf %133
  %p135 = scmp.eq.s32.totalorder %s134, 0
  %p136 = pneg %p135
  %138 = shalt.err (%p136)

</llo_original>
